<compile_context>
chip_gen: v7x
topology: tpu7x:2x2x1
jax: 0.10.0
libtpu: 0.0.40
codegen_flags: <defaults>
</compile_context>

<pallas_src>
import math

import jax
import jax.numpy as jnp
from jax.experimental import pallas as pl
from jax.experimental.pallas import tpu as pltpu

# sigmoid(-1e9) underflows to exactly 0.0 in f32 and log_sigmoid(-1e9) stays finite,
# so padded vocab rows (which also have zero counts) contribute exactly nothing.
_S_PAD_VALUE = -1e9


def unigram_kernel(x_ref, s_ref, o_ll_ref, o_n_ref, o_z_ref, logsig_ref, acc_n_ref):
    """Process one (Vt, Tt) tile of the one-hot stream.

    x_ref:   (Vt, Tt) one-hot tile in its native dtype (int8 / bf16 / f32)
    s_ref:   (Vt, 1)  logits tile (resident across the T axis)
    o_*_ref: (1, 8, 128) per-V-tile partial outputs (broadcast-filled scalars)
    scratch: logsig_ref (Vt, 1) f32,  acc_n_ref (Vt, 1) f32
    """
    k = pl.program_id(1)
    last_k = pl.num_programs(1) - 1

    @pl.when(k == 0)
    def _per_vocab_tile_init():
        s = s_ref[...].astype(jnp.float32)
        # Numerically-stable log-sigmoid: min(s, 0) - log1p(exp(-|s|))   (EUP exp/log)
        logsig_ref[...] = jnp.minimum(s, 0.0) - jnp.log1p(jnp.exp(-jnp.abs(s)))
        acc_n_ref[...] = jnp.zeros_like(acc_n_ref)

    # Steady state: stream the one-hot tile and accumulate per-vocab counts into a
    # vector accumulator (no per-step scalar reduce). Cast AFTER the DMA so HBM
    # traffic stays in the narrow native dtype.
    x = x_ref[...].astype(jnp.float32)                       # (Vt, Tt)
    acc_n_ref[...] += jnp.sum(x, axis=1, keepdims=True)      # (Vt, 1)

    @pl.when(k == last_k)
    def _finalize():
        counts = acc_n_ref[...]                              # (Vt, 1)
        logsig = logsig_ref[...]                             # (Vt, 1)
        ll = jnp.sum(counts * logsig, keepdims=True)         # (1, 1)  sum_v c_v*log_sigmoid(s_v)
        n = jnp.sum(counts, keepdims=True)                   # (1, 1)  sum_v c_v
        z = jnp.sum(jnp.exp(logsig), keepdims=True)          # (1, 1)  sum_v sigmoid(s_v)
        o_ll_ref[0] = jnp.broadcast_to(ll, o_ll_ref.shape[1:])
        o_n_ref[0] = jnp.broadcast_to(n, o_n_ref.shape[1:])
        o_z_ref[0] = jnp.broadcast_to(z, o_z_ref.shape[1:])


def _round_up(x: int, m: int) -> int:
    return ((x + m - 1) // m) * m


def _sublane_quantum(dtype) -> int:
    # Packed sublane tile: f32 -> 8, bf16 -> 16, int8/fp8 -> 32.
    return {4: 8, 2: 16, 1: 32}[jnp.dtype(dtype).itemsize]


def _choose_tile(dim: int, pref: int, quantum: int) -> tuple[int, int]:
    """Return (tile, padded_dim): tile is a quantum-multiple <= pref, padded_dim % tile == 0."""
    padded_min = _round_up(dim, quantum)
    if padded_min <= pref:
        return padded_min, padded_min
    tile = _round_up(pref, quantum)
    return tile, _round_up(dim, tile)


def _vmem_budget_bytes() -> int:
    # Generation-aware scoped-VMEM budget: ~48 MiB on v7x (64 MiB/TC physical),
    # ~96 MiB on v5e/v6e (128 MiB physical). Conservative fallback if the query fails.
    try:
        cap = int(pltpu.get_tpu_info().vmem_capacity_bytes)
    except Exception:
        cap = 64 * 1024 * 1024
    return min((cap * 3) // 4, 96 * 1024 * 1024)


def unigram_forward(x: jax.Array, s: jax.Array) -> jax.Array:
    """out = sum(x, 1, keepdims).T @ log(sigmoid(s) / sum(sigmoid(s))), shape (1, 1) f32."""
    V, T = x.shape
    assert s.shape == (V, 1)

    vmem_limit = _vmem_budget_bytes()
    itemsize = jnp.dtype(x.dtype).itemsize

    # Large, bandwidth-friendly tiles; shrink the T preference until 2 input buffers plus
    # the in-kernel f32 cast temp fit comfortably (matters most on v7x's 64 MiB VMEM/TC).
    vt_pref = 512
    tt_pref = 8192 if vmem_limit >= 72 * 1024 * 1024 else 4096
    while tt_pref > 512 and vt_pref * tt_pref * (2 * itemsize + 4) > vmem_limit // 2:
        tt_pref //= 2

    Vt, V_pad = _choose_tile(V, vt_pref, _sublane_quantum(x.dtype))
    Tt, T_pad = _choose_tile(T, tt_pref, 128)

    if (V_pad, T_pad) != (V, T):
        # Zero-pad the one-hot (padded counts are 0) and pad s with a large negative
        # value (sigmoid -> 0 exactly, log_sigmoid finite) so padding contributes nothing.
        x = jnp.pad(x, ((0, V_pad - V), (0, T_pad - T)))
        s = jnp.pad(s, ((0, V_pad - V), (0, 0)), constant_values=_S_PAD_VALUE)

    num_i = V_pad // Vt
    num_k = T_pad // Tt
    part_shape = jax.ShapeDtypeStruct((num_i, 8, 128), jnp.float32)

    out_ll, out_n, out_z = pl.pallas_call(
        unigram_kernel,
        out_shape=(part_shape, part_shape, part_shape),
        grid_spec=pltpu.PrefetchScalarGridSpec(
            num_scalar_prefetch=0,
            grid=(num_i, num_k),
            in_specs=[
                pl.BlockSpec((Vt, Tt), lambda i, k: (i, k)),   # one-hot stream (native dtype)
                pl.BlockSpec((Vt, 1), lambda i, k: (i, 0)),    # logits, resident across k
            ],
            out_specs=(
                pl.BlockSpec((1, 8, 128), lambda i, k: (i, 0, 0)),
                pl.BlockSpec((1, 8, 128), lambda i, k: (i, 0, 0)),
                pl.BlockSpec((1, 8, 128), lambda i, k: (i, 0, 0)),
            ),
            scratch_shapes=[
                pltpu.VMEM((Vt, 1), jnp.float32),   # log_sigmoid(s) for the current V tile
                pltpu.VMEM((Vt, 1), jnp.float32),   # per-vocab counts accumulator
            ],
        ),
        compiler_params=pltpu.CompilerParams(
            # V axis is parallel (per-V-tile partial outputs, per-tile scratch lifetime),
            # so v7x's two TensorCores each stream half the vocab. T is the reduction axis.
            dimension_semantics=("parallel", "arbitrary"),
            vmem_limit_bytes=vmem_limit,
        ),
    )(x, s)

    # Tiny wrapper combine over the per-V-tile partials (a handful of floats).
    ll = jnp.sum(out_ll[:, 0, 0])
    n = jnp.sum(out_n[:, 0, 0])
    z = jnp.sum(out_z[:, 0, 0])
    return (ll - n * jnp.log(z)).reshape(1, 1)


def unigram_ref(x, s):
    xf = x.astype(jnp.float32)
    counts = jnp.sum(xf, axis=1, keepdims=True)
    sig = jax.nn.sigmoid(s)
    p = sig / jnp.sum(sig)
    return counts.T @ jnp.log(p)


if __name__ == "__main__":
    # Small shapes consistent with the module: V vocab entries, T one-hot samples.
    V, T = 32, 64

    # Parameter init exactly as in Unigram.__init__: s0 = logit(ones(V, 1) / V)
    s0_val = math.log(1.0 / V) - math.log(1.0 - 1.0 / V)
    s = jnp.full((V, 1), s0_val, dtype=jnp.float32)

    # Deterministic one-hot input of shape (V, T); int8 to exercise the narrow-dtype
    # streaming path (0/1 are exact, so the math is identical after the in-kernel cast).
    key = jax.random.PRNGKey(0)
    tokens = jax.random.randint(key, (T,), 0, V)
    x = jax.nn.one_hot(tokens, V, dtype=jnp.int8).T   # (V, T)

    out = unigram_forward(x, s)
    jax.block_until_ready(out)

    ref = unigram_ref(x, s)
    assert out.shape == (1, 1)
    assert jnp.allclose(out, ref, rtol=1e-5, atol=1e-3), (out, ref)

    print("KERNEL_OK")
</pallas_src>

<mosaic_0001>
module attributes {stable_mosaic.version = 11 : i64} {
  func.func @unigram_kernel(%arg0: i32, %arg1: i32, %arg2: memref<32x128xi8, #tpu.memory_space<vmem>>, %arg3: memref<32x1xf32, #tpu.memory_space<vmem>>, %arg4: memref<1x8x128xf32, #tpu.memory_space<vmem>>, %arg5: memref<1x8x128xf32, #tpu.memory_space<vmem>>, %arg6: memref<1x8x128xf32, #tpu.memory_space<vmem>>, %arg7: memref<32x1xf32, #tpu.memory_space<vmem>>, %arg8: memref<32x1xf32, #tpu.memory_space<vmem>>) attributes {dimension_semantics = [#tpu.dimension_semantics<parallel>, #tpu.dimension_semantics<arbitrary>], iteration_bounds = array<i64: 1, 1>, scalar_prefetch = 0 : i64, scratch_operands = 2 : i64, tpu.core_type = #tpu.core_type<tc>, window_params = [{transform_indices = @transform_0, window_bounds = array<i64: 32, 128>}, {transform_indices = @transform_1, window_bounds = array<i64: 32, 1>}, {transform_indices = @transform_2, window_bounds = array<i64: 1, 8, 128>}, {transform_indices = @transform_3, window_bounds = array<i64: 1, 8, 128>}, {transform_indices = @transform_4, window_bounds = array<i64: 1, 8, 128>}]} {
    %c0_i32 = arith.constant 0 : i32
    %0 = arith.cmpi eq, %arg1, %c0_i32 : i32
    %1 = arith.extui %0 : i1 to i32
    %c0_i32_0 = arith.constant 0 : i32
    %2 = arith.cmpi ne, %1, %c0_i32_0 : i32
    scf.if %2 {
      %c0_8 = arith.constant 0 : index
      %c0_9 = arith.constant 0 : index
      %13 = vector.load %arg3[%c0_8, %c0_9] : memref<32x1xf32, #tpu.memory_space<vmem>>, vector<32x1xf32>
      %cst_10 = arith.constant 0.000000e+00 : f32
      %14 = vector.broadcast %cst_10 : f32 to vector<32x1xf32>
      %15 = arith.minimumf %13, %14 : vector<32x1xf32>
      %16 = math.absf %13 : vector<32x1xf32>
      %cst_11 = arith.constant 0.000000e+00 : f32
      %17 = vector.broadcast %cst_11 : f32 to vector<32x1xf32>
      %18 = arith.subf %17, %16 : vector<32x1xf32>
      %19 = math.exp %18 : vector<32x1xf32>
      %20 = math.log1p %19 : vector<32x1xf32>
      %21 = arith.subf %15, %20 : vector<32x1xf32>
      %c0_12 = arith.constant 0 : index
      %c0_13 = arith.constant 0 : index
      %22 = vector.load %arg7[%c0_12, %c0_13] : memref<32x1xf32, #tpu.memory_space<vmem>>, vector<32x1xf32>
      tpu.vector_store %arg7[%c0_12, %c0_13], %21 {strides = array<i32>} : memref<32x1xf32, #tpu.memory_space<vmem>>, vector<32x1xf32>,
      %cst_14 = arith.constant 0.000000e+00 : f32
      %23 = vector.broadcast %cst_14 : f32 to vector<32x1xf32>
      %c0_15 = arith.constant 0 : index
      %c0_16 = arith.constant 0 : index
      %24 = vector.load %arg8[%c0_15, %c0_16] : memref<32x1xf32, #tpu.memory_space<vmem>>, vector<32x1xf32>
      tpu.vector_store %arg8[%c0_15, %c0_16], %23 {strides = array<i32>} : memref<32x1xf32, #tpu.memory_space<vmem>>, vector<32x1xf32>,
    } else {
    }
    %c0 = arith.constant 0 : index
    %c0_1 = arith.constant 0 : index
    %3 = vector.load %arg2[%c0, %c0_1] : memref<32x128xi8, #tpu.memory_space<vmem>>, vector<32x128xi8>
    %4 = arith.sitofp %3 : vector<32x128xi8> to vector<32x128xf32>
    %c0_2 = arith.constant 0 : index
    %c0_3 = arith.constant 0 : index
    %5 = vector.load %arg8[%c0_2, %c0_3] : memref<32x1xf32, #tpu.memory_space<vmem>>, vector<32x1xf32>
    %cst = arith.constant dense<0.000000e+00> : vector<32xf32>
    %6 = vector.multi_reduction <add>, %4, %cst [1] : vector<32x128xf32> to vector<32xf32>
    %7 = vector.shape_cast %6 : vector<32xf32> to vector<32x1xf32>
    %8 = arith.addf %5, %7 : vector<32x1xf32>
    %c0_4 = arith.constant 0 : index
    %c0_5 = arith.constant 0 : index
    %9 = vector.load %arg8[%c0_4, %c0_5] : memref<32x1xf32, #tpu.memory_space<vmem>>, vector<32x1xf32>
    tpu.vector_store %arg8[%c0_4, %c0_5], %8 {strides = array<i32>} : memref<32x1xf32, #tpu.memory_space<vmem>>, vector<32x1xf32>,
    %c0_i32_6 = arith.constant 0 : i32
    %10 = arith.cmpi eq, %arg1, %c0_i32_6 : i32
    %11 = arith.extui %10 : i1 to i32
    %c0_i32_7 = arith.constant 0 : i32
    %12 = arith.cmpi ne, %11, %c0_i32_7 : i32
    scf.if %12 {
      %c0_8 = arith.constant 0 : index
      %c0_9 = arith.constant 0 : index
      %13 = vector.load %arg8[%c0_8, %c0_9] : memref<32x1xf32, #tpu.memory_space<vmem>>, vector<32x1xf32>
      %c0_10 = arith.constant 0 : index
      %c0_11 = arith.constant 0 : index
      %14 = vector.load %arg7[%c0_10, %c0_11] : memref<32x1xf32, #tpu.memory_space<vmem>>, vector<32x1xf32>
      %15 = arith.mulf %13, %14 : vector<32x1xf32>
      %16 = vector.shape_cast %15 : vector<32x1xf32> to vector<1x32x1xf32>
      %cst_12 = arith.constant dense<0.000000e+00> : vector<1xf32>
      %17 = vector.multi_reduction <add>, %16, %cst_12 [1, 2] : vector<1x32x1xf32> to vector<1xf32>
      %18 = vector.shape_cast %17 : vector<1xf32> to vector<1x1x1xf32>
      %19 = vector.extract %18[0, 0, 0] : f32 from vector<1x1x1xf32>
      %20 = vector.broadcast %19 : f32 to vector<1x1xf32>
      %21 = vector.shape_cast %13 : vector<32x1xf32> to vector<1x32x1xf32>
      %cst_13 = arith.constant dense<0.000000e+00> : vector<1xf32>
      %22 = vector.multi_reduction <add>, %21, %cst_13 [1, 2] : vector<1x32x1xf32> to vector<1xf32>
      %23 = vector.shape_cast %22 : vector<1xf32> to vector<1x1x1xf32>
      %24 = vector.extract %23[0, 0, 0] : f32 from vector<1x1x1xf32>
      %25 = vector.broadcast %24 : f32 to vector<1x1xf32>
      %26 = math.exp %14 : vector<32x1xf32>
      %27 = vector.shape_cast %26 : vector<32x1xf32> to vector<1x32x1xf32>
      %cst_14 = arith.constant dense<0.000000e+00> : vector<1xf32>
      %28 = vector.multi_reduction <add>, %27, %cst_14 [1, 2] : vector<1x32x1xf32> to vector<1xf32>
      %29 = vector.shape_cast %28 : vector<1xf32> to vector<1x1x1xf32>
      %30 = vector.extract %29[0, 0, 0] : f32 from vector<1x1x1xf32>
      %31 = vector.broadcast %30 : f32 to vector<1x1xf32>
      %32 = vector.shape_cast %20 : vector<1x1xf32> to vector<1x1xf32>
      %33 = vector.broadcast %32 : vector<1x1xf32> to vector<8x128xf32>
      %c0_15 = arith.constant 0 : index
      %c0_16 = arith.constant 0 : index
      %c0_17 = arith.constant 0 : index
      %34 = vector.load %arg4[%c0_15, %c0_16, %c0_17] : memref<1x8x128xf32, #tpu.memory_space<vmem>>, vector<1x8x128xf32>
      %35 = vector.shape_cast %34 : vector<1x8x128xf32> to vector<8x128xf32>
      %36 = vector.shape_cast %33 : vector<8x128xf32> to vector<1x8x128xf32>
      tpu.vector_store %arg4[%c0_15, %c0_16, %c0_17], %36 {strides = array<i32>} : memref<1x8x128xf32, #tpu.memory_space<vmem>>, vector<1x8x128xf32>,
      %37 = vector.shape_cast %25 : vector<1x1xf32> to vector<1x1xf32>
      %38 = vector.broadcast %37 : vector<1x1xf32> to vector<8x128xf32>
      %c0_18 = arith.constant 0 : index
      %c0_19 = arith.constant 0 : index
      %c0_20 = arith.constant 0 : index
      %39 = vector.load %arg5[%c0_18, %c0_19, %c0_20] : memref<1x8x128xf32, #tpu.memory_space<vmem>>, vector<1x8x128xf32>
      %40 = vector.shape_cast %39 : vector<1x8x128xf32> to vector<8x128xf32>
      %41 = vector.shape_cast %38 : vector<8x128xf32> to vector<1x8x128xf32>
      tpu.vector_store %arg5[%c0_18, %c0_19, %c0_20], %41 {strides = array<i32>} : memref<1x8x128xf32, #tpu.memory_space<vmem>>, vector<1x8x128xf32>,
      %42 = vector.shape_cast %31 : vector<1x1xf32> to vector<1x1xf32>
      %43 = vector.broadcast %42 : vector<1x1xf32> to vector<8x128xf32>
      %c0_21 = arith.constant 0 : index
      %c0_22 = arith.constant 0 : index
      %c0_23 = arith.constant 0 : index
      %44 = vector.load %arg6[%c0_21, %c0_22, %c0_23] : memref<1x8x128xf32, #tpu.memory_space<vmem>>, vector<1x8x128xf32>
      %45 = vector.shape_cast %44 : vector<1x8x128xf32> to vector<8x128xf32>
      %46 = vector.shape_cast %43 : vector<8x128xf32> to vector<1x8x128xf32>
      tpu.vector_store %arg6[%c0_21, %c0_22, %c0_23], %46 {strides = array<i32>} : memref<1x8x128xf32, #tpu.memory_space<vmem>>, vector<1x8x128xf32>,
    } else {
    }
    return
  }
  func.func @transform_0(%arg0: i32, %arg1: i32) -> (i32, i32) {
    %c0_i32 = arith.constant 0 : i32
    return %arg0, %arg1 : i32, i32
  }
  func.func @transform_1(%arg0: i32, %arg1: i32) -> (i32, i32) {
    %c0_i32 = arith.constant 0 : i32
    %c0_i32_0 = arith.constant 0 : i32
    return %arg0, %c0_i32 : i32, i32
  }
  func.func @transform_2(%arg0: i32, %arg1: i32) -> (i32, i32, i32) {
    %c0_i32 = arith.constant 0 : i32
    %c0_i32_0 = arith.constant 0 : i32
    %c0_i32_1 = arith.constant 0 : i32
    return %arg0, %c0_i32, %c0_i32_0 : i32, i32, i32
  }
  func.func @transform_3(%arg0: i32, %arg1: i32) -> (i32, i32, i32) {
    %c0_i32 = arith.constant 0 : i32
    %c0_i32_0 = arith.constant 0 : i32
    %c0_i32_1 = arith.constant 0 : i32
    return %arg0, %c0_i32, %c0_i32_0 : i32, i32, i32
  }
  func.func @transform_4(%arg0: i32, %arg1: i32) -> (i32, i32, i32) {
    %c0_i32 = arith.constant 0 : i32
    %c0_i32_0 = arith.constant 0 : i32
    %c0_i32_1 = arith.constant 0 : i32
    return %arg0, %c0_i32, %c0_i32_0 : i32, i32, i32
  }
}

</mosaic_0001>

<llo_original>
// kernel: tpu_custom_call.1
$region0: #{tpu_custom_call.1}
  #allocation0 [shape = 'u32[]', space=smem, size = 0x4, offset = 0x4, fixed_abs, tag = 'smem constant byte address 0x4 - core index']
  #allocation1 [shape = 'u32[144,128]{1,0:T(1,128)}', space=vmem, size = 0x12000, scoped, tag = 'internal scratch']
  #allocation2 [shape = 'f32[32,1]{1,0:T(8,128)}', space=vmem, size = 0x4000, scoped, tag = 'scratch operand']
  #allocation3 [shape = 'f32[32,1]{1,0:T(8,128)}', space=vmem, size = 0x4000, scoped, tag = 'scratch operand']
  %s0 = inlined_call_operand.vmem [shape: s8[32,128], index: 0, kind: input, shape index: {}]
  %s1 = inlined_call_operand.vmem [shape: f32[32,1], index: 1, kind: input, shape index: {}]
  %s2 = inlined_call_operand.hbm [shape: f32[1,8,128], index: 2, kind: output, shape index: {0}]
  %s3 = inlined_call_operand.hbm [shape: f32[1,8,128], index: 3, kind: output, shape index: {1}]
  %s4 = inlined_call_operand.hbm [shape: f32[1,8,128], index: 4, kind: output, shape index: {2}]
  %5 = xla_tuple %s2, %s3, %s4
  %s6 = sld [smem:[#allocation0]]
  $region42: #{tpu_custom_call.1} parent=0
    _
  %s8 = ssub.s32 1, %s6
  %s9 = scalar_select 0, %s8, %s6
  $region1: #{tpu_custom_call.1} parent=0
    #allocation4 [shape = 'u8[4096]{0}', space=vmem, size = 0x1000, scoped, tag = 'output window, operand 0, single buffered']
    #allocation5 [shape = 's32[1]{0}', space=sflag, size = 0x4, scoped, tag = 'scoped memory for tpu_custom_call.1']
    #allocation6 [shape = 'u8[4096]{0}', space=vmem, size = 0x1000, scoped, tag = 'output window, operand 1, single buffered']
    #allocation7 [shape = 's32[1]{0}', space=sflag, size = 0x4, scoped, tag = 'scoped memory for tpu_custom_call.1']
    #allocation8 [shape = 'u8[4096]{0}', space=vmem, size = 0x1000, scoped, tag = 'output window, operand 2, single buffered']
    %10 = vsyncpa [#allocation5], 0
    %11 = vsyncpa [#allocation7], 0
    // Predicated region
    $region2: #{tpu_custom_call.1} parent=1 // pred_check
      _
    $region3: #{tpu_custom_call.1} parent=1 // pred_check_branch
      %13 = sbr.rel (0) target = $region5
    $region4: #{tpu_custom_call.1} parent=1 // pred_region
      _
    $region5: #{tpu_custom_call.1} parent=1 // pred_fallthru
      _
    // Predicated region
    $region6: #{tpu_custom_call.1} parent=1 // pred_check
      _
    $region7: #{tpu_custom_call.1} parent=1 // pred_check_branch
      %15 = sbr.rel (0) target = $region9
    $region8: #{tpu_custom_call.1} parent=1 // pred_region
      _
    $region9: #{tpu_custom_call.1} parent=1 // pred_fallthru
      _
    %p16 = scmp.eq.s32.totalorder 0, 0
    // Predicated region
    $region10: #{tpu_custom_call.1} parent=1 // pred_check
      %p17 = pneg %p16
    $region11: #{tpu_custom_call.1} parent=1 // pred_check_branch
      %19 = sbr.rel (%p17) target = $region13
    $region12: #{tpu_custom_call.1} parent=1 // pred_region
      %v20 = vld [vmem:[%s1] sm:$0xff]
      %v21 = vld [vmem:[%s1 + $0x8] sm:$0xff]
      %v22 = vld [vmem:[%s1 + $0x10] sm:$0xff]
      %v23 = vld [vmem:[%s1 + $0x18] sm:$0xff]
      %v24 = vmin.f32 %v20, 0.0
      %v25 = vmin.f32 %v21, 0.0
      %v26 = vmin.f32 %v22, 0.0
      %v27 = vmin.f32 %v23, 0.0
      %v28 = vand.u32 2147483647, %v20
      %v29 = vand.u32 2147483647, %v21
      %v30 = vand.u32 2147483647, %v22
      %v31 = vand.u32 2147483647, %v23
      %v32 = vsub.f32 0.0, %v28
      %v33 = vsub.f32 0.0, %v29
      %v34 = vsub.f32 0.0, %v30
      %v35 = vsub.f32 0.0, %v31
      %v36 = vmul.f32 %v32, 1.442695
      %v37 = vpow.pop %v36
      %v38 = vmul.f32 %v33, 1.442695
      %v39 = vpow.pop %v38
      %v40 = vmul.f32 %v34, 1.442695
      %v41 = vpow.pop %v40
      %v42 = vmul.f32 %v35, 1.442695
      %v43 = vpow.pop %v42
      %v44 = vadd.f32 %v37, 1.0
      %v45 = vlog2.pop %v44
      %v46 = vmul.f32 %v45, 0.6931472
      %v47 = vmul.f32 -0.5, %v37
      %v48 = vadd.f32 %v47, 1.0
      %v49 = vmul.f32 %v48, %v37
      %v50 = vand.u32 2147483647, %v37
      %vm51 = vcmp.lt.f32.partialorder %v50, 0.0004427343
      %v52 = vsel %vm51, %v49, %v46
      %v53 = vadd.f32 %v39, 1.0
      %v54 = vlog2.pop %v53
      %v55 = vmul.f32 %v54, 0.6931472
      %v56 = vmul.f32 -0.5, %v39
      %v57 = vadd.f32 %v56, 1.0
      %v58 = vmul.f32 %v57, %v39
      %v59 = vand.u32 2147483647, %v39
      %vm60 = vcmp.lt.f32.partialorder %v59, 0.0004427343
      %v61 = vsel %vm60, %v58, %v55
      %v62 = vadd.f32 %v41, 1.0
      %v63 = vlog2.pop %v62
      %v64 = vmul.f32 %v63, 0.6931472
      %v65 = vmul.f32 -0.5, %v41
      %v66 = vadd.f32 %v65, 1.0
      %v67 = vmul.f32 %v66, %v41
      %v68 = vand.u32 2147483647, %v41
      %vm69 = vcmp.lt.f32.partialorder %v68, 0.0004427343
      %v70 = vsel %vm69, %v67, %v64
      %v71 = vadd.f32 %v43, 1.0
      %v72 = vlog2.pop %v71
      %v73 = vmul.f32 %v72, 0.6931472
      %v74 = vmul.f32 -0.5, %v43
      %v75 = vadd.f32 %v74, 1.0
      %v76 = vmul.f32 %v75, %v43
      %v77 = vand.u32 2147483647, %v43
      %vm78 = vcmp.lt.f32.partialorder %v77, 0.0004427343
      %v79 = vsel %vm78, %v76, %v73
      %v80 = vsub.f32 %v24, %v52
      %v81 = vsub.f32 %v25, %v61
      %v82 = vsub.f32 %v26, %v70
      %v83 = vsub.f32 %v27, %v79
      %vm84 = vcmask 7168
      %85 = vst.msk [vmem:[#allocation2] sm:$0xff] %vm84, %v80
      %86 = vst.msk [vmem:[#allocation2 + $0x8] sm:$0xff] %vm84, %v81
      %87 = vst.msk [vmem:[#allocation2 + $0x10] sm:$0xff] %vm84, %v82
      %88 = vst.msk [vmem:[#allocation2 + $0x18] sm:$0xff] %vm84, %v83
      %89 = vst.msk [vmem:[#allocation3] sm:$0xff] %vm84, 0.0
      %90 = vst.msk [vmem:[#allocation3 + $0x8] sm:$0xff] %vm84, 0.0
      %91 = vst.msk [vmem:[#allocation3 + $0x10] sm:$0xff] %vm84, 0.0
      %92 = vst.msk [vmem:[#allocation3 + $0x18] sm:$0xff] %vm84, 0.0
    $region13: #{tpu_custom_call.1} parent=1 // pred_fallthru
      _
    %v93 = vld [vmem:[%s0] sm:$0xff]
    %v94 = vunpack.c.0.s8 %v93
    %v95 = vunpack.c.1.s8 %v93
    %v96 = vunpack.c.2.s8 %v93
    %v97 = vunpack.c.3.s8 %v93
    %v98 = vcvt.s32.f32 %v94
    %v99 = vcvt.s32.f32 %v95
    %v100 = vcvt.s32.f32 %v96
    %v101 = vcvt.s32.f32 %v97
    %v102 = vld [vmem:[#allocation3] sm:$0xff]
    %v103 = vld [vmem:[#allocation3 + $0x8] sm:$0xff]
    %v104 = vld [vmem:[#allocation3 + $0x10] sm:$0xff]
    %v105 = vld [vmem:[#allocation3 + $0x18] sm:$0xff]
    %106 = vadd.xlane.f32.xlu0 %v98
    %v107 = vpop.xlane.xlu0 %106
    %108 = vadd.xlane.f32.xlu0 %v99
    %v109 = vpop.xlane.xlu0 %108
    %110 = vadd.xlane.f32.xlu0 %v100
    %v111 = vpop.xlane.xlu0 %110
    %112 = vadd.xlane.f32.xlu0 %v101
    %v113 = vpop.xlane.xlu0 %112
    %v114 = vadd.f32 %v102, %v107
    %v115 = vadd.f32 %v103, %v109
    %v116 = vadd.f32 %v104, %v111
    %v117 = vadd.f32 %v105, %v113
    %vm118 = vcmask 7168
    %119 = vst.msk [vmem:[#allocation3] sm:$0xff] %vm118, %v114
    %120 = vst.msk [vmem:[#allocation3 + $0x8] sm:$0xff] %vm118, %v115
    %121 = vst.msk [vmem:[#allocation3 + $0x10] sm:$0xff] %vm118, %v116
    %122 = vst.msk [vmem:[#allocation3 + $0x18] sm:$0xff] %vm118, %v117
    // Predicated region
    $region14: #{tpu_custom_call.1} parent=1 // pred_check
      %p123 = pneg %p16
    $region15: #{tpu_custom_call.1} parent=1 // pred_check_branch
      %125 = sbr.rel (%p123) target = $region17
    $region16: #{tpu_custom_call.1} parent=1 // pred_region
      %v126 = vld [vmem:[#allocation3] sm:$0xff]
      %v127 = vld [vmem:[#allocation3 + $0x8] sm:$0xff]
      %v128 = vld [vmem:[#allocation3 + $0x10] sm:$0xff]
      %v129 = vld [vmem:[#allocation3 + $0x18] sm:$0xff]
      %v130 = vld [vmem:[#allocation2] sm:$0xff]
      %v131 = vld [vmem:[#allocation2 + $0x8] sm:$0xff]
      %v132 = vld [vmem:[#allocation2 + $0x10] sm:$0xff]
      %v133 = vld [vmem:[#allocation2 + $0x18] sm:$0xff]
      %v134 = vmul.f32 %v126, %v130
      %v135 = vmul.f32 %v127, %v131
      %v136 = vmul.f32 %v128, %v132
      %v137 = vmul.f32 %v129, %v133
      %v138 = vsel %vm118, %v134, 0.0
      %v139 = vsel %vm118, %v135, 0.0
      %v140 = vadd.f32 %v138, %v139
      %v141 = vsel %vm118, %v136, 0.0
      %v142 = vadd.f32 %v140, %v141
      %v143 = vsel %vm118, %v137, 0.0
      %v144 = vadd.f32 %v142, %v143
      %145 = vadd.xlane.f32.xlu0 %v144
      %v146 = vpop.xlane.xlu0 %145
      %v147 = vrot.slane %v146, 4
      %v148 = vadd.f32 %v146, %v147
      %v149 = vrot.slane %v148, 2
      %v150 = vadd.f32 %v148, %v149
      %v151 = vrot.slane %v150, 1
      %v152 = vadd.f32 %v150, %v151
      %s153 = vtos %v152
      %v154 = vsel %vm118, %v126, 0.0
      %v155 = vsel %vm118, %v127, 0.0
      %v156 = vadd.f32 %v154, %v155
      %v157 = vsel %vm118, %v128, 0.0
      %v158 = vadd.f32 %v156, %v157
      %v159 = vsel %vm118, %v129, 0.0
      %v160 = vadd.f32 %v158, %v159
      %161 = vadd.xlane.f32.xlu0 %v160
      %v162 = vpop.xlane.xlu0 %161
      %v163 = vrot.slane %v162, 4
      %v164 = vadd.f32 %v162, %v163
      %v165 = vrot.slane %v164, 2
      %v166 = vadd.f32 %v164, %v165
      %v167 = vrot.slane %v166, 1
      %v168 = vadd.f32 %v166, %v167
      %s169 = vtos %v168
      %v170 = vmul.f32 %v130, 1.442695
      %v171 = vpow.pop %v170
      %v172 = vmul.f32 %v131, 1.442695
      %v173 = vpow.pop %v172
      %v174 = vmul.f32 %v132, 1.442695
      %v175 = vpow.pop %v174
      %v176 = vmul.f32 %v133, 1.442695
      %v177 = vpow.pop %v176
      %v178 = vsel %vm118, %v171, 0.0
      %v179 = vsel %vm118, %v173, 0.0
      %v180 = vadd.f32 %v178, %v179
      %v181 = vsel %vm118, %v175, 0.0
      %v182 = vadd.f32 %v180, %v181
      %v183 = vsel %vm118, %v177, 0.0
      %v184 = vadd.f32 %v182, %v183
      %185 = vadd.xlane.f32.xlu0 %v184
      %v186 = vpop.xlane.xlu0 %185
      %v187 = vrot.slane %v186, 4
      %v188 = vadd.f32 %v186, %v187
      %v189 = vrot.slane %v188, 2
      %v190 = vadd.f32 %v188, %v189
      %v191 = vrot.slane %v190, 1
      %v192 = vadd.f32 %v190, %v191
      %s193 = vtos %v192
      %v194 = vstv %s153
      %195 = vst [vmem:[#allocation4] sm:$0xff] %v194
      %v196 = vstv %s169
      %197 = vst [vmem:[#allocation6] sm:$0xff] %v196
      %v198 = vstv %s193
      %199 = vst [vmem:[#allocation8] sm:$0xff] %v198
    $region17: #{tpu_custom_call.1} parent=1 // pred_fallthru
      _
    // Predicated region
    $region18: #{tpu_custom_call.1} parent=1 // pred_check
      _
    $region19: #{tpu_custom_call.1} parent=1 // pred_check_branch
      %201 = sbr.rel (0) target = $region21
    $region20: #{tpu_custom_call.1} parent=1 // pred_region
      %s203 = ssub.s32 128, 128
      %204 = vsyncadd [#allocation5], %s203
      %s206 = sshll.u32 [#allocation4], 4
      %s207 = int_to_ptr.vmem [resolvable:$true] %s206
      %209 = dma.vmem_to_hbm [thread:$0]  %s207, 128, %s2, [#allocation5]
    $region21: #{tpu_custom_call.1} parent=1 // pred_fallthru
      _
    // Predicated region
    $region22: #{tpu_custom_call.1} parent=1 // pred_check
      _
    $region23: #{tpu_custom_call.1} parent=1 // pred_check_branch
      %211 = sbr.rel (0) target = $region25
    $region24: #{tpu_custom_call.1} parent=1 // pred_region
      %s213 = ssub.s32 128, 128
      %214 = vsyncadd [#allocation7], %s213
      %s216 = sshll.u32 [#allocation6], 4
      %s217 = int_to_ptr.vmem [resolvable:$true] %s216
      %219 = dma.vmem_to_hbm [thread:$0]  %s217, 128, %s3, [#allocation7]
    $region25: #{tpu_custom_call.1} parent=1 // pred_fallthru
      _
    // Predicated region
    $region26: #{tpu_custom_call.1} parent=1 // pred_check
      _
    $region27: #{tpu_custom_call.1} parent=1 // pred_check_branch
      %221 = sbr.rel (0) target = $region29
    $region28: #{tpu_custom_call.1} parent=1 // pred_region
      %s223 = ssub.s32 128, 128
      %224 = vsyncadd [#allocation7], %s223
      %s226 = sshll.u32 [#allocation8], 4
      %s227 = int_to_ptr.vmem [resolvable:$true] %s226
      %229 = dma.vmem_to_hbm [thread:$0]  %s227, 128, %s4, [#allocation7]
    $region29: #{tpu_custom_call.1} parent=1 // pred_fallthru
      _
    // Predicated region
    $region30: #{tpu_custom_call.1} parent=1 // pred_check
      _
    $region31: #{tpu_custom_call.1} parent=1 // pred_check_branch
      %231 = sbr.rel (0) target = $region33
    $region32: #{tpu_custom_call.1} parent=1 // pred_region
      %232 = dma.done [#allocation5], 128
    $region33: #{tpu_custom_call.1} parent=1 // pred_fallthru
      _
    // Predicated region
    $region34: #{tpu_custom_call.1} parent=1 // pred_check
      _
    $region35: #{tpu_custom_call.1} parent=1 // pred_check_branch
      %234 = sbr.rel (0) target = $region37
    $region36: #{tpu_custom_call.1} parent=1 // pred_region
      %235 = dma.done [#allocation7], 128
    $region37: #{tpu_custom_call.1} parent=1 // pred_fallthru
      _
    // Predicated region
    $region38: #{tpu_custom_call.1} parent=1 // pred_check
      _
    $region39: #{tpu_custom_call.1} parent=1 // pred_check_branch
      %237 = sbr.rel (0) target = $region41
    $region40: #{tpu_custom_call.1} parent=1 // pred_region
      %238 = dma.done [#allocation7], 128
    $region41: #{tpu_custom_call.1} parent=1 // pred_fallthru
      _
    %239 = vsyncpa [#allocation5], 1
    %240 = vsyncpa [#allocation7], 1

</llo_original>
